<compile_context>
chip_gen: v7x
topology: tpu7x:2x2x1
jax: 0.10.0
libtpu: 0.0.40
codegen_flags: <defaults>
</compile_context>

<pallas_src>
import functools

import jax
import jax.numpy as jnp
from jax.experimental import pallas as pl
from jax.experimental.pallas import tpu as pltpu


_ROW_GROUP = 64  # rows folded per inner accumulation group (register-safe)


def _fill_values(dtype):
    """Identity elements for the running-max / running-min accumulators."""
    if jnp.issubdtype(dtype, jnp.floating):
        return float("-inf"), float("inf")
    info = jnp.iinfo(dtype)
    return int(info.min), int(info.max)


# ---------------------------------------------------------------------------
# Fast path: whole (N*C, H*W) array as a single VMEM block (tiny inputs).
# ---------------------------------------------------------------------------
def _spool_small_kernel(x_ref, o_ref):
    x = x_ref[...]
    mx = jnp.max(x, axis=-1, keepdims=True)
    mn = jnp.min(x, axis=-1, keepdims=True)
    o_ref[...] = (mx + mn).astype(o_ref.dtype)


# ---------------------------------------------------------------------------
# Tiled path: grid = (NC row tiles, HW spatial tiles); spatial axis reduces.
# ---------------------------------------------------------------------------
def _spool_tiled_kernel(x_ref, o_ref, max_sc, min_sc, *, thw, last_valid, rg):
    k = pl.program_id(1)
    last_k = pl.num_programs(1) - 1
    dtype = max_sc.dtype
    max_fill, min_fill = _fill_values(dtype)
    max_fill_c = jnp.array(max_fill, dtype)
    min_fill_c = jnp.array(min_fill, dtype)
    tnc = max_sc.shape[0]
    ragged = last_valid < thw  # only the final k block can be ragged

    # Static row groups: bounds live vregs to ~3 * rg/8 regardless of tnc.
    groups = [(g * rg, min(rg, tnc - g * rg)) for g in range(-(-tnc // rg))]

    @pl.when(k == 0)
    def _init():
        max_sc[...] = jnp.full(max_sc.shape, max_fill, dtype)
        min_sc[...] = jnp.full(min_sc.shape, min_fill, dtype)

    def accumulate(valid, masked_tail):
        # Fold the first `valid` spatial elements of this block into scratch.
        nf = valid // 128          # full 128-lane chunks of real data
        tail = valid % 128         # partial chunk (if any)
        for r0, rs in groups:
            rows = pl.ds(r0, rs)
            run_max = max_sc[rows, :]
            run_min = min_sc[rows, :]
            for j in range(nf):    # static unroll: lane-dense VPU max/min
                chunk = x_ref[rows, pl.ds(j * 128, 128)]
                run_max = jnp.maximum(run_max, chunk)
                run_min = jnp.minimum(run_min, chunk)
            if tail > 0 and masked_tail:
                # Straddling chunk of the ragged LAST block: upper lanes hold
                # unspecified pad -> mask with a (1,128) iota (sublane bcast).
                chunk = x_ref[rows, pl.ds(nf * 128, 128)]
                lane = jax.lax.broadcasted_iota(jnp.int32, (1, 128), 1)
                ok = lane < tail
                run_max = jnp.maximum(run_max, jnp.where(ok, chunk, max_fill_c))
                run_min = jnp.minimum(run_min, jnp.where(ok, chunk, min_fill_c))
            elif tail > 0:
                # Real sub-128 tail (single full-dim spatial block, never
                # ragged): reduce exactly, fold via broadcast (exact for max/min).
                tl = x_ref[rows, pl.ds(nf * 128, tail)]
                run_max = jnp.maximum(run_max, jnp.max(tl, axis=-1, keepdims=True))
                run_min = jnp.minimum(run_min, jnp.min(tl, axis=-1, keepdims=True))
            max_sc[rows, :] = run_max
            min_sc[rows, :] = run_min

    if not ragged:
        accumulate(thw, masked_tail=False)
    else:
        # Unmasked fast path for every step but the last.
        @pl.when(k != last_k)
        def _body():
            accumulate(thw, masked_tail=False)

        # Masking exists only here, only for the straddling chunk; fully
        # out-of-bounds chunks are skipped entirely.
        @pl.when(k == last_k)
        def _last():
            accumulate(last_valid, masked_tail=True)

    @pl.when(k == last_k)
    def _final():
        # One cross-lane (XLU) collapse per row group, once per row tile.
        for r0, rs in groups:
            rows = pl.ds(r0, rs)
            mx = jnp.max(max_sc[rows, :], axis=-1, keepdims=True)
            mn = jnp.min(min_sc[rows, :], axis=-1, keepdims=True)
            o_ref[rows, :] = (mx + mn).astype(o_ref.dtype)


def spool(x, *, block_bytes=8 * 1024 * 1024, small_bytes=512 * 1024):
    """SPool forward: (N, C, H, W) -> (N, C)."""
    N, C, H, W = x.shape
    nc, hw = N * C, H * W
    # Free for contiguous NCHW: merges (N, C) and (H, W) without data movement.
    x2 = x.reshape(nc, hw)
    itemsize = x2.dtype.itemsize

    if nc * hw * itemsize <= small_bytes:
        # Tiny input: single block, no grid (launch overhead dominates here).
        out = pl.pallas_call(
            _spool_small_kernel,
            out_shape=jax.ShapeDtypeStruct((nc, 1), x.dtype),
            in_specs=[pl.BlockSpec((nc, hw), lambda: (0, 0))],
            out_specs=pl.BlockSpec((nc, 1), lambda: (0, 0)),
        )(x2)
        return out.reshape(N, C)

    # ---- tiled, auto-pipelined path --------------------------------------
    sub = max(8, 32 // itemsize)          # dtype-aware min sublane multiple
    rg = _ROW_GROUP                       # register-safe rows per inner group

    # Spatial tile: as much of hw as fits the block budget at `rg` rows.
    thw_budget = max(128, (block_bytes // (rg * itemsize)) // 128 * 128)
    if hw <= thw_budget:
        thw = hw                          # single spatial block (full-dim OK)
    else:
        thw = thw_budget                  # 128-aligned spatial tile

    # Row tile: grow toward the block budget only when hw already fits in one
    # spatial block (keeps vreg pressure bounded via the in-kernel row groups).
    if thw == hw:
        tnc = max(rg, (block_bytes // max(1, hw * itemsize)) // rg * rg)
    else:
        tnc = rg
    if tnc >= nc:
        if nc >= 2 * sub:
            # Guarantee >= 2 row tiles so the "parallel" axis splits across
            # v7x's two TensorCores.
            half = -(-nc // 2)
            tnc = -(-half // sub) * sub
        else:
            tnc = nc                      # too small to split; full-dim block

    grid = (pl.cdiv(nc, tnc), pl.cdiv(hw, thw))
    n_k = grid[1]
    last_valid = hw - (n_k - 1) * thw     # valid spatial extent of last block
    # Invariant: a real (unmasked) sub-128 tail only occurs in the single
    # full-dim spatial block case, which is never ragged.
    assert 1 <= last_valid <= thw
    assert (last_valid == thw) or (thw % 128 == 0)

    block_in = tnc * thw * itemsize
    scratch_bytes = 2 * tnc * 128 * itemsize
    vmem_limit = 2 * block_in + 2 * scratch_bytes + (4 << 20)
    vmem_limit = int(min(max(vmem_limit, 32 << 20), 56 << 20))

    kernel = functools.partial(
        _spool_tiled_kernel, thw=thw, last_valid=last_valid, rg=rg)

    out = pl.pallas_call(
        kernel,
        out_shape=jax.ShapeDtypeStruct((nc, 1), x.dtype),
        grid_spec=pltpu.PrefetchScalarGridSpec(
            num_scalar_prefetch=0,
            grid=grid,
            in_specs=[pl.BlockSpec((tnc, thw), lambda i, k: (i, k))],
            out_specs=pl.BlockSpec((tnc, 1), lambda i, k: (i, 0)),
            scratch_shapes=[pltpu.VMEM((tnc, 128), x.dtype),
                            pltpu.VMEM((tnc, 128), x.dtype)],
        ),
        compiler_params=pltpu.CompilerParams(
            dimension_semantics=("parallel", "arbitrary"),
            vmem_limit_bytes=vmem_limit),
    )(x2)
    return out.reshape(N, C)


def spool_ref(x):
    # Pure-JAX reference matching the PyTorch semantics.
    return jnp.max(x, axis=(2, 3)) + jnp.min(x, axis=(2, 3))


if __name__ == "__main__":
    key = jax.random.PRNGKey(0)
    k1, k2, k3, k4, k5 = jax.random.split(key, 5)

    # 1) Small shape consistent with the module -> single-block fast path.
    x1 = jax.random.normal(k1, (2, 4, 16, 16), dtype=jnp.float32)
    o1 = jax.block_until_ready(spool(x1))
    assert o1.shape == (2, 4), o1.shape
    assert jnp.allclose(o1, spool_ref(x1), atol=1e-6, rtol=1e-6), "small path"

    # 2) Tiled path: multi-step RAGGED reduction (hw=4620, thw=512 -> 10 steps,
    #    last step masks a 12-lane straddling chunk) + 2-way row split.
    x2 = jax.random.normal(k2, (2, 8, 60, 77), dtype=jnp.float32)
    o2 = jax.block_until_ready(spool(x2, block_bytes=64 * 512 * 4, small_bytes=0))
    assert o2.shape == (2, 8), o2.shape
    assert jnp.allclose(o2, spool_ref(x2), atol=1e-6, rtol=1e-6), "ragged path"

    # 3) Tiled path: multi-step NON-ragged reduction (hw=4096, thw=1024 -> 4).
    x3 = jax.random.normal(k3, (2, 8, 64, 64), dtype=jnp.float32)
    o3 = jax.block_until_ready(spool(x3, block_bytes=64 * 1024 * 4, small_bytes=0))
    assert o3.shape == (2, 8), o3.shape
    assert jnp.allclose(o3, spool_ref(x3), atol=1e-6, rtol=1e-6), "multi-k path"

    # 4) Tiled path: single full-dim spatial block with sub-128 exact tail and
    #    a large NC row tile processed in 64-row groups (2 row tiles).
    x4 = jax.random.normal(k4, (64, 16, 10, 7), dtype=jnp.float32)
    o4 = jax.block_until_ready(spool(x4, small_bytes=0))
    assert o4.shape == (64, 16), o4.shape
    assert jnp.allclose(o4, spool_ref(x4), atol=1e-6, rtol=1e-6), "row-group path"

    # 5) bf16 input -> dtype-aware (16-row) sublane alignment of the row split.
    x5 = jax.random.normal(k5, (4, 8, 24, 33), dtype=jnp.bfloat16)
    o5 = jax.block_until_ready(spool(x5, small_bytes=0))
    assert o5.shape == (4, 8), o5.shape
    assert jnp.allclose(o5.astype(jnp.float32), spool_ref(x5).astype(jnp.float32),
                        atol=1e-2, rtol=1e-2), "bf16 path"

    print("KERNEL_OK")
</pallas_src>

<mosaic_0001>
module attributes {stable_mosaic.version = 11 : i64} {
  func.func @_spool_small_kernel(%arg0: memref<8x256xf32, #tpu.memory_space<vmem>>, %arg1: memref<8x1xf32, #tpu.memory_space<vmem>>) attributes {dimension_semantics = [], scalar_prefetch = 0 : i64, scratch_operands = 0 : i64, tpu.core_type = #tpu.core_type<tc>} {
    %c0 = arith.constant 0 : index
    %c0_0 = arith.constant 0 : index
    %0 = vector.load %arg0[%c0, %c0_0] : memref<8x256xf32, #tpu.memory_space<vmem>>, vector<8x256xf32>
    %cst = arith.constant dense<0xFF800000> : vector<8xf32>
    %1 = vector.multi_reduction <maximumf>, %0, %cst [1] : vector<8x256xf32> to vector<8xf32>
    %2 = vector.shape_cast %1 : vector<8xf32> to vector<8x1xf32>
    %cst_1 = arith.constant dense<0x7F800000> : vector<8xf32>
    %3 = vector.multi_reduction <minimumf>, %0, %cst_1 [1] : vector<8x256xf32> to vector<8xf32>
    %4 = vector.shape_cast %3 : vector<8xf32> to vector<8x1xf32>
    %5 = arith.addf %2, %4 : vector<8x1xf32>
    %c0_2 = arith.constant 0 : index
    %c0_3 = arith.constant 0 : index
    %6 = vector.load %arg1[%c0_2, %c0_3] : memref<8x1xf32, #tpu.memory_space<vmem>>, vector<8x1xf32>
    tpu.vector_store %arg1[%c0_2, %c0_3], %5 {strides = array<i32>} : memref<8x1xf32, #tpu.memory_space<vmem>>, vector<8x1xf32>,
    return
  }
}

</mosaic_0001>

<llo_original>
// kernel: tpu_custom_call.1
$region0: #{tpu_custom_call.1}
  #allocation0 [shape = 'u32[]', space=smem, size = 0x4, offset = 0x4, fixed_abs, tag = 'smem constant byte address 0x4 - core index']
  #allocation1 [shape = 'u32[144,128]{1,0:T(1,128)}', space=vmem, size = 0x12000, scoped, tag = 'internal scratch']
  %s0 = inlined_call_operand.hbm [shape: f32[8,256], index: 0, kind: input, shape index: {}]
  %s1 = inlined_call_operand.vmem [shape: f32[8,1], index: 1, kind: output, shape index: {}]
  %s2 = sld [smem:[#allocation0]]
  $region18: #{tpu_custom_call.1} parent=0
    _
  %s4 = ssub.s32 1, %s2
  %s5 = scalar_select 0, %s4, %s2
  $region1: #{tpu_custom_call.1} parent=0
    #allocation2 [shape = 'u8[8192]{0}', space=vmem, size = 0x2000, scoped, tag = 'input window, operand 0, single buffered']
    #allocation3 [shape = 's32[1]{0}', space=sflag, size = 0x4, scoped, tag = 'scoped memory for tpu_custom_call.1']
    %6 = vsyncpa [#allocation3], 0
    // Predicated region
    $region2: #{tpu_custom_call.1} parent=1 // pred_check
      _
    $region3: #{tpu_custom_call.1} parent=1 // pred_check_branch
      %8 = sbr.rel (0) target = $region5
    $region4: #{tpu_custom_call.1} parent=1 // pred_region
      %s10 = ssub.s32 256, 256
      %11 = vsyncadd [#allocation3], %s10
      %s13 = sshll.u32 [#allocation2], 4
      %s14 = int_to_ptr.vmem [resolvable:$true] %s13
      %16 = dma.hbm_to_vmem [thread:$0]  %s0, 256, %s14, [#allocation3]
    $region5: #{tpu_custom_call.1} parent=1 // pred_fallthru
      _
    // Predicated region
    $region6: #{tpu_custom_call.1} parent=1 // pred_check
      _
    $region7: #{tpu_custom_call.1} parent=1 // pred_check_branch
      %18 = sbr.rel (0) target = $region9
    $region8: #{tpu_custom_call.1} parent=1 // pred_region
      %19 = dma.done [#allocation3], 256
    $region9: #{tpu_custom_call.1} parent=1 // pred_fallthru
      _
    %v20 = vld [vmem:[#allocation2] sm:$0xff]
    %v21 = vld [vmem:[#allocation2 + $0x8] sm:$0xff]
    %v22 = vmax.f32 %v20, %v21
    %23 = vmax.xlane.f32.xlu0 %v22
    %v24 = vpop.xlane.xlu0 %23
    %v25 = vmin.f32 %v20, %v21
    %26 = vmin.xlane.f32.xlu0 %v25
    %v27 = vpop.xlane.xlu0 %26
    %v28 = vadd.f32 %v24, %v27
    %vm29 = vcmask 7168
    %30 = vst.msk [vmem:[%s1] sm:$0xff] %vm29, %v28
    // Predicated region
    $region10: #{tpu_custom_call.1} parent=1 // pred_check
      _
    $region11: #{tpu_custom_call.1} parent=1 // pred_check_branch
      %32 = sbr.rel (0) target = $region13
    $region12: #{tpu_custom_call.1} parent=1 // pred_region
      _
    $region13: #{tpu_custom_call.1} parent=1 // pred_fallthru
      _
    // Predicated region
    $region14: #{tpu_custom_call.1} parent=1 // pred_check
      _
    $region15: #{tpu_custom_call.1} parent=1 // pred_check_branch
      %34 = sbr.rel (0) target = $region17
    $region16: #{tpu_custom_call.1} parent=1 // pred_region
      _
    $region17: #{tpu_custom_call.1} parent=1 // pred_fallthru
      _
    %35 = vsyncpa [#allocation3], 1

</llo_original>
